<compile_context>
chip_gen: v6e
topology: v6e:2x2x1
jax: 0.10.0
libtpu: 0.0.40
codegen_flags: <defaults>
</compile_context>

<pallas_src>
import functools
import math

import jax
import jax.numpy as jnp
from jax import lax
from jax.experimental import pallas as pl
from jax.experimental.pallas import tpu as pltpu

_INV_SQRT2 = 1.0 / math.sqrt(2.0)


def mlp_kernel(x_ref, w1_ref, b1_ref, w2_ref, b2_ref, o_ref, acc_ref, *, mm_dtype):
    h_idx = pl.program_id(1)
    n_h = pl.num_programs(1)

    @pl.when(h_idx == 0)
    def _():
        acc_ref[...] = jnp.zeros_like(acc_ref)

    # Downcast x in-kernel (no extra HBM pass in the wrapper); MXU matmul, f32 accumulate.
    x = x_ref[...].astype(mm_dtype)
    h = jnp.dot(x, w1_ref[...], preferred_element_type=jnp.float32)
    h = h + b1_ref[...]                      # [1, th] f32, broadcasts over rows

    # Exact (erf-based) GELU, matching nn.GELU() default; computed in f32.
    h = 0.5 * h * (1.0 + lax.erf(h * _INV_SQRT2))

    # Dropout(0.1): identity in eval mode.

    # Second linear: accumulate this hidden panel's contribution in f32.
    acc_ref[...] += jnp.dot(h.astype(mm_dtype), w2_ref[...],
                            preferred_element_type=jnp.float32)

    @pl.when(h_idx == n_h - 1)
    def _():
        o_ref[...] = (acc_ref[...] + b2_ref[...]).astype(o_ref.dtype)


def _cdiv(a, b):
    return (a + b - 1) // b


def _round_up(n, m):
    return ((n + m - 1) // m) * m


def mlp_pallas(x2d, w1, b1, w2, b2, *, tm=1024, th=1024, use_bf16=True,
               out_dtype=None, pad_hidden=True):
    """x2d: [N, D_in]; w1: [D_in, H]; b1: [H]; w2: [H, D_out]; b2: [D_out]."""
    N, D_in = x2d.shape
    H = w1.shape[1]
    D_out = w2.shape[1]
    out_dtype = x2d.dtype if out_dtype is None else jnp.dtype(out_dtype)
    mm_dtype = jnp.bfloat16 if use_bf16 else jnp.float32

    # Exact hidden-dim padding to a lane multiple: zero W1 columns / b1 entries / W2 rows
    # contribute exactly 0, so results are unchanged while GELU/MXU work is full-lane.
    if pad_hidden and H % 128 != 0:
        Hp = _round_up(H, 128)
        w1 = jnp.pad(w1, ((0, 0), (0, Hp - H)))
        b1 = jnp.pad(b1, ((0, Hp - H),))
        w2 = jnp.pad(w2, ((0, Hp - H), (0, 0)))
        H = Hp

    # Row tile: large for big N, but capped so the parallel row axis has >= 2 grid steps
    # whenever N allows (keeps both v7x TensorCores busy; harmless on v5e/v6e).
    tm = _round_up(max(8, tm), 8)
    if N > 8:
        tm = min(tm, _round_up(_cdiv(N, 2), 8))
    else:
        tm = 8
    grid_m = _cdiv(N, tm)

    # Hidden-dim panel size: whole H when it fits; otherwise a 128-multiple divisor of H.
    if H <= th:
        th_eff = H
    else:
        th_eff = 0
        for cand in range(th - th % 128, 127, -128):
            if H % cand == 0:
                th_eff = cand
                break
        if th_eff == 0:
            th_eff = H  # TODO(synk): non-128-divisible large H falls back to resident panels
    grid_h = H // th_eff if th_eff != H else 1

    w1_mm = w1.astype(mm_dtype)
    w2_mm = w2.astype(mm_dtype)
    b1_2d = b1.reshape(1, H).astype(jnp.float32)
    b2_2d = b2.reshape(1, D_out).astype(jnp.float32)

    # Grid-invariant weights (grid_h == 1) stay single-buffered and VMEM-resident;
    # streamed panels (grid_h > 1) use default double buffering.
    w_pipe = dict(pipeline_mode=pl.Buffered(1)) if grid_h == 1 else {}

    x_spec = pl.BlockSpec((tm, D_in), lambda i, h: (i, 0))
    w1_spec = pl.BlockSpec((D_in, th_eff), lambda i, h: (0, h), **w_pipe)
    b1_spec = pl.BlockSpec((1, th_eff), lambda i, h: (0, h), **w_pipe)
    w2_spec = pl.BlockSpec((th_eff, D_out), lambda i, h: (h, 0), **w_pipe)
    b2_spec = pl.BlockSpec((1, D_out), lambda i, h: (0, 0), **w_pipe)
    o_spec = pl.BlockSpec((tm, D_out), lambda i, h: (i, 0))

    # VMEM footprint estimate (+50% and 4 MiB headroom); only override the conservative
    # 16 MiB scoped default (v5e) when actually needed, and never request v7x's full 64 MiB.
    in_item = x2d.dtype.itemsize
    w_item = jnp.dtype(mm_dtype).itemsize
    out_item = jnp.dtype(out_dtype).itemsize
    n_wbuf = 1 if grid_h == 1 else 2
    vmem_raw = (
        2 * tm * D_in * in_item                              # x tile (double buffered)
        + 2 * tm * D_out * out_item                          # out tile (double buffered)
        + n_wbuf * (D_in * th_eff + th_eff * D_out) * w_item  # weight panels
        + n_wbuf * (th_eff + D_out) * 4                      # bias panels (f32)
        + tm * D_out * 4                                     # f32 accumulator scratch
        + tm * th_eff * 4                                    # f32 intermediate h
    )
    vmem_request = int(1.5 * vmem_raw) + (4 << 20)
    cp_kwargs = dict(dimension_semantics=("parallel", "arbitrary"))
    if vmem_request > (16 << 20):
        cp_kwargs["vmem_limit_bytes"] = min(vmem_request, 56 << 20)

    kernel = functools.partial(mlp_kernel, mm_dtype=mm_dtype)
    return pl.pallas_call(
        kernel,
        out_shape=jax.ShapeDtypeStruct((N, D_out), out_dtype),
        grid_spec=pltpu.PrefetchScalarGridSpec(
            num_scalar_prefetch=0,
            grid=(grid_m, grid_h),
            in_specs=[x_spec, w1_spec, b1_spec, w2_spec, b2_spec],
            out_specs=o_spec,
            scratch_shapes=[pltpu.VMEM((tm, D_out), jnp.float32)],
        ),
        compiler_params=pltpu.CompilerParams(**cp_kwargs),
    )(x2d, w1_mm, b1_2d, w2_mm, b2_2d)


def mlp_reference_f32(x2d, w1, b1, w2, b2):
    """Pure f32 reference matching the PyTorch module in eval mode."""
    h = x2d.astype(jnp.float32) @ w1.astype(jnp.float32) + b1.astype(jnp.float32)
    h = 0.5 * h * (1.0 + lax.erf(h * _INV_SQRT2))
    return h @ w2.astype(jnp.float32) + b2.astype(jnp.float32)


def mlp_reference_mm(x2d, w1, b1, w2, b2, mm_dtype=jnp.bfloat16):
    """Reference that mimics the kernel's bf16-matmul / f32-accumulate path."""
    h = jnp.dot(x2d.astype(mm_dtype), w1.astype(mm_dtype),
                preferred_element_type=jnp.float32) + b1.astype(jnp.float32)
    h = 0.5 * h * (1.0 + lax.erf(h * _INV_SQRT2))
    out = jnp.dot(h.astype(mm_dtype), w2.astype(mm_dtype),
                  preferred_element_type=jnp.float32) + b2.astype(jnp.float32)
    return out


if __name__ == "__main__":
    # Small shapes consistent with the module: batch=2, seq=8, input_dim=32, output_dim=32
    batch, seq = 2, 8
    input_dim, output_dim = 32, 32
    hidden = 2 * output_dim  # 64

    key = jax.random.PRNGKey(0)
    kx, kw1, kb1, kw2, kb2 = jax.random.split(key, 5)

    x = jax.random.normal(kx, (batch, seq, input_dim), dtype=jnp.float32)

    # Deterministic "PyTorch-like" init (uniform +/- 1/sqrt(fan_in)); stored as [in, out]
    lim1 = 1.0 / math.sqrt(input_dim)
    w1 = jax.random.uniform(kw1, (input_dim, hidden), minval=-lim1, maxval=lim1, dtype=jnp.float32)
    b1 = jax.random.uniform(kb1, (hidden,), minval=-lim1, maxval=lim1, dtype=jnp.float32)
    lim2 = 1.0 / math.sqrt(hidden)
    w2 = jax.random.uniform(kw2, (hidden, output_dim), minval=-lim2, maxval=lim2, dtype=jnp.float32)
    b2 = jax.random.uniform(kb2, (output_dim,), minval=-lim2, maxval=lim2, dtype=jnp.float32)

    x2d = x.reshape(batch * seq, input_dim)

    out2d = mlp_pallas(x2d, w1, b1, w2, b2)
    out = out2d.reshape(batch, seq, output_dim)
    jax.block_until_ready(out)

    # Tight check vs a reference following the same bf16-matmul / f32-accumulate path.
    ref_mm2d = mlp_reference_mm(x2d, w1, b1, w2, b2)
    ref_mm = ref_mm2d.reshape(batch, seq, output_dim)
    assert jnp.allclose(out, ref_mm, atol=1e-3, rtol=1e-3), "mismatch vs bf16-path reference"

    # Looser check vs the pure f32 reference (bf16 matmul rounding).
    ref_f32 = mlp_reference_f32(x2d, w1, b1, w2, b2).reshape(batch, seq, output_dim)
    assert jnp.allclose(out, ref_f32, atol=5e-2, rtol=5e-2), "mismatch vs f32 reference"

    # Row count NOT divisible by the tile: exercises the clipped partial last block
    # (no wrapper-side padding pass anymore).
    x_odd = jax.random.normal(jax.random.PRNGKey(1), (21, input_dim), dtype=jnp.float32)
    out_odd = mlp_pallas(x_odd, w1, b1, w2, b2)
    jax.block_until_ready(out_odd)
    ref_odd = mlp_reference_mm(x_odd, w1, b1, w2, b2)
    assert out_odd.shape == (21, output_dim)
    assert jnp.allclose(out_odd, ref_odd, atol=1e-3, rtol=1e-3), "mismatch on partial-tile case"

    # bf16 output path (halves the dominant output HBM writeback for mem-bound cases).
    out_bf16 = mlp_pallas(x2d, w1, b1, w2, b2, out_dtype=jnp.bfloat16)
    jax.block_until_ready(out_bf16)
    assert out_bf16.dtype == jnp.bfloat16
    assert jnp.allclose(out_bf16.astype(jnp.float32), ref_mm2d, atol=3e-2, rtol=3e-2), \
        "mismatch on bf16-output case"

    print("KERNEL_OK")
</pallas_src>

<mosaic_0001>
module attributes {stable_mosaic.version = 11 : i64} {
  func.func @mlp_kernel(%arg0: i32, %arg1: i32, %arg2: memref<8x32xf32, #tpu.memory_space<vmem>>, %arg3: memref<32x128xbf16, #tpu.memory_space<vmem>>, %arg4: memref<1x128xf32, #tpu.memory_space<vmem>>, %arg5: memref<128x32xbf16, #tpu.memory_space<vmem>>, %arg6: memref<1x32xf32, #tpu.memory_space<vmem>>, %arg7: memref<8x32xf32, #tpu.memory_space<vmem>>, %arg8: memref<8x32xf32, #tpu.memory_space<vmem>>) attributes {dimension_semantics = [#tpu.dimension_semantics<parallel>, #tpu.dimension_semantics<arbitrary>], iteration_bounds = array<i64: 2, 1>, scalar_prefetch = 0 : i64, scratch_operands = 1 : i64, tpu.core_type = #tpu.core_type<tc>, window_params = [{transform_indices = @transform_0, window_bounds = array<i64: 8, 32>}, {pipeline_mode = #tpu.pipeline_mode<synchronous>, transform_indices = @transform_1, window_bounds = array<i64: 32, 128>}, {pipeline_mode = #tpu.pipeline_mode<synchronous>, transform_indices = @transform_2, window_bounds = array<i64: 1, 128>}, {pipeline_mode = #tpu.pipeline_mode<synchronous>, transform_indices = @transform_3, window_bounds = array<i64: 128, 32>}, {pipeline_mode = #tpu.pipeline_mode<synchronous>, transform_indices = @transform_4, window_bounds = array<i64: 1, 32>}, {transform_indices = @transform_5, window_bounds = array<i64: 8, 32>}]} {
    %c0_i32 = arith.constant 0 : i32
    %0 = arith.cmpi eq, %arg1, %c0_i32 : i32
    %1 = arith.extui %0 : i1 to i32
    %c0_i32_0 = arith.constant 0 : i32
    %2 = arith.cmpi ne, %1, %c0_i32_0 : i32
    scf.if %2 {
      %cst_18 = arith.constant 0.000000e+00 : f32
      %27 = vector.broadcast %cst_18 : f32 to vector<8x32xf32>
      %c0_19 = arith.constant 0 : index
      %c0_20 = arith.constant 0 : index
      %28 = vector.load %arg8[%c0_19, %c0_20] : memref<8x32xf32, #tpu.memory_space<vmem>>, vector<8x32xf32>
      tpu.vector_store %arg8[%c0_19, %c0_20], %27 {strides = array<i32>} : memref<8x32xf32, #tpu.memory_space<vmem>>, vector<8x32xf32>,
    } else {
    }
    %c0 = arith.constant 0 : index
    %c0_1 = arith.constant 0 : index
    %3 = vector.load %arg2[%c0, %c0_1] : memref<8x32xf32, #tpu.memory_space<vmem>>, vector<8x32xf32>
    %4 = arith.truncf %3 : vector<8x32xf32> to vector<8x32xbf16>
    %c0_2 = arith.constant 0 : index
    %c0_3 = arith.constant 0 : index
    %5 = vector.load %arg3[%c0_2, %c0_3] : memref<32x128xbf16, #tpu.memory_space<vmem>>, vector<32x128xbf16>
    %cst = arith.constant dense<0.000000e+00> : vector<8x128xf32>
    %6 = tpu.matmul %4, %5, %cst {dimension_numbers = #tpu.dot_dimension_numbers<[1], [0], [0], [1], [0, 0, 1, 1], [], []>} : vector<8x32xbf16>, vector<32x128xbf16>, vector<8x128xf32> -> vector<8x128xf32>
    %c0_4 = arith.constant 0 : index
    %c0_5 = arith.constant 0 : index
    %7 = vector.load %arg4[%c0_4, %c0_5] : memref<1x128xf32, #tpu.memory_space<vmem>>, vector<1x128xf32>
    %8 = vector.broadcast %7 : vector<1x128xf32> to vector<8x128xf32>
    %9 = arith.addf %6, %8 : vector<8x128xf32>
    %cst_6 = arith.constant 5.000000e-01 : f32
    %10 = vector.broadcast %cst_6 : f32 to vector<8x128xf32>
    %11 = arith.mulf %10, %9 : vector<8x128xf32>
    %cst_7 = arith.constant 0.707106769 : f32
    %12 = vector.broadcast %cst_7 : f32 to vector<8x128xf32>
    %13 = arith.mulf %9, %12 : vector<8x128xf32>
    %14 = math.erf %13 : vector<8x128xf32>
    %cst_8 = arith.constant 1.000000e+00 : f32
    %15 = vector.broadcast %cst_8 : f32 to vector<8x128xf32>
    %16 = arith.addf %15, %14 : vector<8x128xf32>
    %17 = arith.mulf %11, %16 : vector<8x128xf32>
    %c0_9 = arith.constant 0 : index
    %c0_10 = arith.constant 0 : index
    %18 = vector.load %arg8[%c0_9, %c0_10] : memref<8x32xf32, #tpu.memory_space<vmem>>, vector<8x32xf32>
    %19 = arith.truncf %17 : vector<8x128xf32> to vector<8x128xbf16>
    %c0_11 = arith.constant 0 : index
    %c0_12 = arith.constant 0 : index
    %20 = vector.load %arg5[%c0_11, %c0_12] : memref<128x32xbf16, #tpu.memory_space<vmem>>, vector<128x32xbf16>
    %cst_13 = arith.constant dense<0.000000e+00> : vector<8x32xf32>
    %21 = tpu.matmul %19, %20, %cst_13 {dimension_numbers = #tpu.dot_dimension_numbers<[1], [0], [0], [1], [0, 0, 1, 1], [], []>} : vector<8x128xbf16>, vector<128x32xbf16>, vector<8x32xf32> -> vector<8x32xf32>
    %22 = arith.addf %18, %21 : vector<8x32xf32>
    %c0_14 = arith.constant 0 : index
    %c0_15 = arith.constant 0 : index
    %23 = vector.load %arg8[%c0_14, %c0_15] : memref<8x32xf32, #tpu.memory_space<vmem>>, vector<8x32xf32>
    tpu.vector_store %arg8[%c0_14, %c0_15], %22 {strides = array<i32>} : memref<8x32xf32, #tpu.memory_space<vmem>>, vector<8x32xf32>,
    %c0_i32_16 = arith.constant 0 : i32
    %24 = arith.cmpi eq, %arg1, %c0_i32_16 : i32
    %25 = arith.extui %24 : i1 to i32
    %c0_i32_17 = arith.constant 0 : i32
    %26 = arith.cmpi ne, %25, %c0_i32_17 : i32
    scf.if %26 {
      %c0_18 = arith.constant 0 : index
      %c0_19 = arith.constant 0 : index
      %27 = vector.load %arg8[%c0_18, %c0_19] : memref<8x32xf32, #tpu.memory_space<vmem>>, vector<8x32xf32>
      %c0_20 = arith.constant 0 : index
      %c0_21 = arith.constant 0 : index
      %28 = vector.load %arg6[%c0_20, %c0_21] : memref<1x32xf32, #tpu.memory_space<vmem>>, vector<1x32xf32>
      %29 = vector.broadcast %28 : vector<1x32xf32> to vector<8x32xf32>
      %30 = arith.addf %27, %29 : vector<8x32xf32>
      %c0_22 = arith.constant 0 : index
      %c0_23 = arith.constant 0 : index
      %31 = vector.load %arg7[%c0_22, %c0_23] : memref<8x32xf32, #tpu.memory_space<vmem>>, vector<8x32xf32>
      tpu.vector_store %arg7[%c0_22, %c0_23], %30 {strides = array<i32>} : memref<8x32xf32, #tpu.memory_space<vmem>>, vector<8x32xf32>,
    } else {
    }
    return
  }
  func.func @transform_0(%arg0: i32, %arg1: i32) -> (i32, i32) {
    %c0_i32 = arith.constant 0 : i32
    %c0_i32_0 = arith.constant 0 : i32
    return %arg0, %c0_i32 : i32, i32
  }
  func.func @transform_1(%arg0: i32, %arg1: i32) -> (i32, i32) {
    %c0_i32 = arith.constant 0 : i32
    %c0_i32_0 = arith.constant 0 : i32
    return %c0_i32, %arg1 : i32, i32
  }
  func.func @transform_2(%arg0: i32, %arg1: i32) -> (i32, i32) {
    %c0_i32 = arith.constant 0 : i32
    %c0_i32_0 = arith.constant 0 : i32
    return %c0_i32, %arg1 : i32, i32
  }
  func.func @transform_3(%arg0: i32, %arg1: i32) -> (i32, i32) {
    %c0_i32 = arith.constant 0 : i32
    %c0_i32_0 = arith.constant 0 : i32
    return %arg1, %c0_i32 : i32, i32
  }
  func.func @transform_4(%arg0: i32, %arg1: i32) -> (i32, i32) {
    %c0_i32 = arith.constant 0 : i32
    %c0_i32_0 = arith.constant 0 : i32
    %c0_i32_1 = arith.constant 0 : i32
    return %c0_i32, %c0_i32_0 : i32, i32
  }
  func.func @transform_5(%arg0: i32, %arg1: i32) -> (i32, i32) {
    %c0_i32 = arith.constant 0 : i32
    %c0_i32_0 = arith.constant 0 : i32
    return %arg0, %c0_i32 : i32, i32
  }
}

</mosaic_0001>

<llo_original>
// kernel: tpu_custom_call.1
$region0: #{tpu_custom_call.1}
  #allocation0 [shape = 'u32[]', space=smem, size = 0x4, offset = 0x4, fixed_abs, tag = 'smem constant byte address 0x4 - core index']
  #allocation1 [shape = 'u32[144,128]{1,0:T(1,128)}', space=vmem, size = 0x12000, scoped, tag = 'internal scratch']
  #allocation2 [shape = 'f32[8,32]{1,0:T(8,128)}', space=vmem, size = 0x1000, scoped, tag = 'scratch operand']
  %s0 = inlined_call_operand.vmem [shape: f32[16,32], index: 0, kind: input, shape index: {}]
  %s1 = inlined_call_operand.vmem [shape: bf16[32,128], index: 1, kind: input, shape index: {}]
  %s2 = inlined_call_operand.vmem [shape: f32[1,128], index: 2, kind: input, shape index: {}]
  %s3 = inlined_call_operand.vmem [shape: bf16[128,32], index: 3, kind: input, shape index: {}]
  %s4 = inlined_call_operand.vmem [shape: f32[1,32], index: 4, kind: input, shape index: {}]
  %s5 = inlined_call_operand.hbm [shape: f32[16,32], index: 5, kind: output, shape index: {}]
  %s6 = sld [smem:[#allocation0]]
  $region61: #{tpu_custom_call.1} parent=0
    _
  %s8 = ssub.s32 1, %s6
  %s9 = scalar_select 0, %s8, %s6
  $region1: #{tpu_custom_call.1} parent=0
    #allocation3 [shape = 'u8[8192]{0}', space=vmem, size = 0x2000, scoped, tag = 'output window, operand 0']
    #allocation4 [shape = 's32[2]{0}', space=sflag, size = 0x8, scoped, tag = 'scoped memory for tpu_custom_call.1']
    %10 = vsyncpa [#allocation4], 0
    %s11 = scalar_lea.sflag [#allocation4], 1
    %12 = vsyncpa %s11, 0
    loop: start=0, step=1, limit=4
    $region2: #{tpu_custom_call.1} parent=1 // loop_pre_header
      _
    $region3: #{tpu_custom_call.1} parent=1 // loop_header
      %s14 = sphi 0, %s18
      %p15 = scmp.ge.s32.totalorder %s14, 4
      %s21 = sphi 0, %s33
      %s22 = sphi 0, %s29
      %s23 = sphi 0, %s21
      %s24 = sphi 0, %s22
      %s25 = sphi 0, %s23
      %s26 = sphi 0, %s24
      %s36 = sphi 0, %s38
      %s39 = sphi 0, %s36
      %s40 = sphi 0, %s39
      %s56 = sphi 0, %s40
      %s62 = sphi 0, %s64
      %s65 = sphi 0, %s62
      %s66 = sphi 0, %s65
      %s82 = sphi 0, %s66
      %s88 = sphi 0, %s90
      %s91 = sphi 0, %s88
      %s92 = sphi 0, %s91
      %s108 = sphi 0, %s92
      %s114 = sphi 0, %s116
      %s117 = sphi 0, %s114
      %s118 = sphi 0, %s117
      %s134 = sphi 0, %s118
      %s138 = sphi 0, %s138
      %s140 = sphi 0, %s138
      %s141 = sphi 0, %s140
      %s155 = sphi 0, %s141
      %s161 = sphi 0, %s163
      %s164 = sphi 0, %s161
      %s165 = sphi 0, %s164
      %s181 = sphi 0, %s165
    $region4: #{tpu_custom_call.1} parent=1 // loop_header_branch
      %17 = sbr.rel (%p15) target = $region8
    $region5: #{tpu_custom_call.1} parent=1 // loop_body
      %s19 = ssub.s32 %s14, 1
      %s20 = ssub.s32 %s14, 2
      %s27 = sadd.s32 1, %s22
      %p28 = scmp.ge.s32.totalorder %s27, 1
      %s29 = scalar_select %p28, 0, %s27
      %s30 = sadd.s32 1, %s21
      %s31 = scalar_select %p28, %s30, %s21
      %p32 = scmp.ge.s32.totalorder %s31, 2
      %s33 = scalar_select %p32, 0, %s31
      %s34 = ssub.s32 %s21, %s33
      %p35 = scmp.eq.s32.totalorder %s34, 0
      %s37 = sadd.s32 %s36, 1
      %s38 = scalar_select %p35, %s36, %s37
      %p41 = pneg %p35
      %p42 = scmp.eq.s32.totalorder %s14, 1
      %p43 = por %p41, %p42
      %p44 = scmp.ne.s32.totalorder %s36, %s39
      %p45 = scmp.eq.s32.totalorder %s14, 0
      %p46 = por %p44, %p45
      %p47 = scmp.ne.s32.totalorder %s36, %s39
      %p48 = scmp.eq.s32.totalorder %s19, 1
      %p49 = por %p47, %p48
      %p50 = scmp.ne.s32.totalorder %s39, %s40
      %p51 = scmp.eq.s32.totalorder %s19, 0
      %p52 = por %p50, %p51
      %p53 = scmp.ne.s32.totalorder %s39, %s40
      %p54 = scmp.eq.s32.totalorder %s20, 1
      %p55 = por %p53, %p54
      %p57 = scmp.ne.s32.totalorder %s40, %s56
      %p58 = scmp.eq.s32.totalorder %s20, 0
      %p59 = por %p57, %p58
      %s60 = ssub.s32 %s22, %s29
      %p61 = scmp.eq.s32.totalorder %s60, 0
      %s63 = sadd.s32 %s62, 1
      %s64 = scalar_select %p61, %s62, %s63
      %p67 = pneg %p61
      %p68 = scmp.eq.s32.totalorder %s14, 1
      %p69 = por %p67, %p68
      %p70 = scmp.ne.s32.totalorder %s62, %s65
      %p71 = scmp.eq.s32.totalorder %s14, 0
      %p72 = por %p70, %p71
      %p73 = scmp.ne.s32.totalorder %s62, %s65
      %p74 = scmp.eq.s32.totalorder %s19, 1
      %p75 = por %p73, %p74
      %p76 = scmp.ne.s32.totalorder %s65, %s66
      %p77 = scmp.eq.s32.totalorder %s19, 0
      %p78 = por %p76, %p77
      %p79 = scmp.ne.s32.totalorder %s65, %s66
      %p80 = scmp.eq.s32.totalorder %s20, 1
      %p81 = por %p79, %p80
      %p83 = scmp.ne.s32.totalorder %s66, %s82
      %p84 = scmp.eq.s32.totalorder %s20, 0
      %p85 = por %p83, %p84
      %s86 = ssub.s32 %s22, %s29
      %p87 = scmp.eq.s32.totalorder %s86, 0
      %s89 = sadd.s32 %s88, 1
      %s90 = scalar_select %p87, %s88, %s89
      %p93 = pneg %p87
      %p94 = scmp.eq.s32.totalorder %s14, 1
      %p95 = por %p93, %p94
      %p96 = scmp.ne.s32.totalorder %s88, %s91
      %p97 = scmp.eq.s32.totalorder %s14, 0
      %p98 = por %p96, %p97
      %p99 = scmp.ne.s32.totalorder %s88, %s91
      %p100 = scmp.eq.s32.totalorder %s19, 1
      %p101 = por %p99, %p100
      %p102 = scmp.ne.s32.totalorder %s91, %s92
      %p103 = scmp.eq.s32.totalorder %s19, 0
      %p104 = por %p102, %p103
      %p105 = scmp.ne.s32.totalorder %s91, %s92
      %p106 = scmp.eq.s32.totalorder %s20, 1
      %p107 = por %p105, %p106
      %p109 = scmp.ne.s32.totalorder %s92, %s108
      %p110 = scmp.eq.s32.totalorder %s20, 0
      %p111 = por %p109, %p110
      %s112 = ssub.s32 %s22, %s29
      %p113 = scmp.eq.s32.totalorder %s112, 0
      %s115 = sadd.s32 %s114, 1
      %s116 = scalar_select %p113, %s114, %s115
      %p119 = pneg %p113
      %p120 = scmp.eq.s32.totalorder %s14, 1
      %p121 = por %p119, %p120
      %p122 = scmp.ne.s32.totalorder %s114, %s117
      %p123 = scmp.eq.s32.totalorder %s14, 0
      %p124 = por %p122, %p123
      %p125 = scmp.ne.s32.totalorder %s114, %s117
      %p126 = scmp.eq.s32.totalorder %s19, 1
      %p127 = por %p125, %p126
      %p128 = scmp.ne.s32.totalorder %s117, %s118
      %p129 = scmp.eq.s32.totalorder %s19, 0
      %p130 = por %p128, %p129
      %p131 = scmp.ne.s32.totalorder %s117, %s118
      %p132 = scmp.eq.s32.totalorder %s20, 1
      %p133 = por %p131, %p132
      %p135 = scmp.ne.s32.totalorder %s118, %s134
      %p136 = scmp.eq.s32.totalorder %s20, 0
      %p137 = por %p135, %p136
      %s139 = sadd.s32 %s138, 1
      %p142 = scmp.eq.s32.totalorder %s14, 1
      %p143 = scmp.ne.s32.totalorder %s138, %s140
      %p144 = scmp.eq.s32.totalorder %s14, 0
      %p145 = por %p143, %p144
      %p146 = scmp.ne.s32.totalorder %s138, %s140
      %p147 = scmp.eq.s32.totalorder %s19, 1
      %p148 = por %p146, %p147
      %p149 = scmp.ne.s32.totalorder %s140, %s141
      %p150 = scmp.eq.s32.totalorder %s19, 0
      %p151 = por %p149, %p150
      %p152 = scmp.ne.s32.totalorder %s140, %s141
      %p153 = scmp.eq.s32.totalorder %s20, 1
      %p154 = por %p152, %p153
      %p156 = scmp.ne.s32.totalorder %s141, %s155
      %p157 = scmp.eq.s32.totalorder %s20, 0
      %p158 = por %p156, %p157
      %s159 = ssub.s32 %s21, %s33
      %p160 = scmp.eq.s32.totalorder %s159, 0
      %s162 = sadd.s32 %s161, 1
      %s163 = scalar_select %p160, %s161, %s162
      %p166 = pneg %p160
      %p167 = scmp.eq.s32.totalorder %s14, 1
      %p168 = por %p166, %p167
      %p169 = scmp.ne.s32.totalorder %s161, %s164
      %p170 = scmp.eq.s32.totalorder %s14, 0
      %p171 = por %p169, %p170
      %p172 = scmp.ne.s32.totalorder %s161, %s164
      %p173 = scmp.eq.s32.totalorder %s19, 1
      %p174 = por %p172, %p173
      %p175 = scmp.ne.s32.totalorder %s164, %s165
      %p176 = scmp.eq.s32.totalorder %s19, 0
      %p177 = por %p175, %p176
      %p178 = scmp.ne.s32.totalorder %s164, %s165
      %p179 = scmp.eq.s32.totalorder %s20, 1
      %p180 = por %p178, %p179
      %p182 = scmp.ne.s32.totalorder %s165, %s181
      %p183 = scmp.eq.s32.totalorder %s20, 0
      %p184 = por %p182, %p183
      %p185 = scmp.le.s32.totalorder 1, %s14
      %p186 = scmp.lt.s32.totalorder %s14, 3
      %p187 = pnand %p185, %p186
      %p188 = pneg %p187
      // Predicated region
      $region9: #{tpu_custom_call.1} parent=5 // pred_check
        _
      $region10: #{tpu_custom_call.1} parent=5 // pred_check_branch
        %190 = sbr.rel (%p187) target = $region12
      $region11: #{tpu_custom_call.1} parent=5 // pred_region
        %s191 = ssub.s32 %s14, 1
        // Predicated region
        $region13: #{tpu_custom_call.1} parent=11 // pred_check
          %p192 = pneg %p78
        $region14: #{tpu_custom_call.1} parent=11 // pred_check_branch
          %194 = sbr.rel (%p192) target = $region16
        $region15: #{tpu_custom_call.1} parent=11 // pred_region
          %p195 = scmp.lt.s32.totalorder %s24, 0
          %s196 = scalar_select %p195, %s24, 0
          %s197 = smul.addr %s196, 4
          %s198 = scalar_lea.vmem %s1, %s197
        $region16: #{tpu_custom_call.1} parent=11 // pred_fallthru
          _
        // Predicated region
        $region17: #{tpu_custom_call.1} parent=11 // pred_check
          %p199 = pneg %p104
        $region18: #{tpu_custom_call.1} parent=11 // pred_check_branch
          %201 = sbr.rel (%p199) target = $region20
        $region19: #{tpu_custom_call.1} parent=11 // pred_region
          %p202 = scmp.lt.s32.totalorder %s24, 0
          %s203 = scalar_select %p202, %s24, 0
          %s204 = scalar_lea.vmem %s2, %s203
        $region20: #{tpu_custom_call.1} parent=11 // pred_fallthru
          _
        // Predicated region
        $region21: #{tpu_custom_call.1} parent=11 // pred_check
          %p205 = pneg %p130
        $region22: #{tpu_custom_call.1} parent=11 // pred_check_branch
          %207 = sbr.rel (%p205) target = $region24
        $region23: #{tpu_custom_call.1} parent=11 // pred_region
          %s208 = smul.u32 16, %s24
          %p209 = scmp.lt.s32.totalorder %s208, 15
          %s210 = scalar_select %p209, %s208, 15
          %s211 = smul.addr %s210, 4
          %s212 = scalar_lea.vmem %s3, %s211
          %s213 = smul.u32 16, %s24
        $region24: #{tpu_custom_call.1} parent=11 // pred_fallthru
          _
        // Predicated region
        $region25: #{tpu_custom_call.1} parent=11 // pred_check
          %p214 = pneg %p151
        $region26: #{tpu_custom_call.1} parent=11 // pred_check_branch
          %216 = sbr.rel (%p214) target = $region28
        $region27: #{tpu_custom_call.1} parent=11 // pred_region
          _
        $region28: #{tpu_custom_call.1} parent=11 // pred_fallthru
          _
      $region12: #{tpu_custom_call.1} parent=5 // pred_fallthru
        _
      %p217 = scmp.lt.s32.totalorder %s14, 2
      // Predicated region
      $region29: #{tpu_custom_call.1} parent=5 // pred_check
        %p218 = pneg %p217
      $region30: #{tpu_custom_call.1} parent=5 // pred_check_branch
        %220 = sbr.rel (%p218) target = $region32
      $region31: #{tpu_custom_call.1} parent=5 // pred_region
        // Predicated region
        $region33: #{tpu_custom_call.1} parent=31 // pred_check
          %p221 = pneg %p46
        $region34: #{tpu_custom_call.1} parent=31 // pred_check_branch
          %223 = sbr.rel (%p221) target = $region36
        $region35: #{tpu_custom_call.1} parent=31 // pred_region
          %p224 = scmp.lt.s32.totalorder %s21, 1
          %s225 = scalar_select %p224, %s21, 1
          %s226 = smul.addr %s225, 8
          %s227 = scalar_lea.vmem %s0, %s226
        $region36: #{tpu_custom_call.1} parent=31 // pred_fallthru
          _
      $region32: #{tpu_custom_call.1} parent=5 // pred_fallthru
        _
      %p228 = scmp.le.s32.totalorder 1, %s14
      %p229 = scmp.lt.s32.totalorder %s14, 3
      %p230 = pnand %p228, %p229
      %p231 = pneg %p230
      // Predicated region
      $region37: #{tpu_custom_call.1} parent=5 // pred_check
        _
      $region38: #{tpu_custom_call.1} parent=5 // pred_check_branch
        %233 = sbr.rel (%p230) target = $region40
      $region39: #{tpu_custom_call.1} parent=5 // pred_region
        %s234 = ssub.s32 %s14, 1
        %p235 = scmp.lt.s32.totalorder %s23, 1
        %s236 = scalar_select %p235, %s23, 1
        %s237 = smul.addr %s236, 8
        %s238 = scalar_lea.vmem %s0, %s237
        %p239 = pneg %p52
        %p240 = pneg %p49
        %p241 = scmp.lt.s32.totalorder %s24, 0
        %s242 = scalar_select %p241, %s24, 0
        %s243 = smul.addr %s242, 4
        %s244 = scalar_lea.vmem %s1, %s243
        %p245 = pneg %p78
        %p246 = pneg %p75
        %p247 = scmp.lt.s32.totalorder %s24, 0
        %s248 = scalar_select %p247, %s24, 0
        %s249 = scalar_lea.vmem %s2, %s248
        %p250 = pneg %p104
        %p251 = pneg %p101
        %s252 = smul.u32 16, %s24
        %p253 = scmp.lt.s32.totalorder %s252, 15
        %s254 = scalar_select %p253, %s252, 15
        %s255 = smul.addr %s254, 4
        %s256 = scalar_lea.vmem %s3, %s255
        %p257 = pneg %p130
        %p258 = pneg %p127
        %p259 = pneg %p151
        %p260 = pneg %p148
        %p261 = pneg %p177
        %p262 = pneg %p174
        %s263 = sand.u32 %s164, 1
        %s264 = scalar_lea.sflag [#allocation4], %s263
        %s265 = sand.u32 %s164, 1
        %s266 = smul.addr %s265, 8
        %s267 = scalar_lea.vmem [#allocation3], %s266
        %p268 = scmp.lt.s32.totalorder %s23, 1
        %s269 = scalar_select %p268, %s23, 1
        %s270 = smul.addr %s269, 8
        %s271 = scalar_lea.vmem %s0, %s270
        %p272 = scmp.lt.s32.totalorder %s24, 0
        %s273 = scalar_select %p272, %s24, 0
        %s274 = smul.addr %s273, 4
        %s275 = scalar_lea.vmem %s1, %s274
        %p276 = scmp.lt.s32.totalorder %s24, 0
        %s277 = scalar_select %p276, %s24, 0
        %s278 = scalar_lea.vmem %s2, %s277
        %s279 = smul.u32 16, %s24
        %p280 = scmp.lt.s32.totalorder %s279, 15
        %s281 = scalar_select %p280, %s279, 15
        %s282 = smul.addr %s281, 4
        %s283 = scalar_lea.vmem %s3, %s282
        %s284 = smul.u32 16, %s24
        %p286 = scmp.eq.s32.totalorder %s24, 0
        // Predicated region
        $region41: #{tpu_custom_call.1} parent=39 // pred_check
          %p287 = pneg %p286
        $region42: #{tpu_custom_call.1} parent=39 // pred_check_branch
          %289 = sbr.rel (%p287) target = $region44
        $region43: #{tpu_custom_call.1} parent=39 // pred_region
          %vm290 = vcmask 261120
          %291 = vst.msk [vmem:[#allocation2] sm:$0xff] %vm290, 0.0
        $region44: #{tpu_custom_call.1} parent=39 // pred_fallthru
          _
        %v292 = vld [vmem:[%s271] sm:$0xff]
        %v293 = vpack.c.bf16 %v292, %v292
        %v294 = vld [vmem:[%s275] sm:$0xf]
        %v295 = vld [vmem:[%s275 + $0x4] sm:$0xf]
        %v296 = vld [vmem:[%s275 + $0x8] sm:$0xf]
        %v297 = vld [vmem:[%s275 + $0xc] sm:$0xf]
        %v298 = vld [vmem:[%s278] sm:$0x1]
        %v300 = vlaneseq
        %v301 = vshrl.u32 %v300, 7
        %v302 = vsub.s32 0, %v301
        %v303 = vrot.slane %v298, %v302
        %v309 = vunpack.c.l.b16 %v294
        %v310 = vunpack.c.l.b16 %v295
        %v311 = vunpack.c.l.b16 %v296
        %v312 = vunpack.c.l.b16 %v297
        %v313 = vpack.c.b16 %v310, %v309
        %v314 = vpack.c.b16 %v312, %v311
        %vm317 = vcmask 261120
        %v319 = vsel %vm317, %v293, 0
        %321 = vmatprep.subr.bf16.mxu0 0
        %322 = vmatpush1.bf16.msra.mxu0 0
        %323 = vmatprep.subr.bf16.mxu0 0
        %324 = vmatpush1.bf16.msra.mxu0 0
        %325 = vmatprep.subr.bf16.mxu0 0
        %326 = vmatpush1.bf16.msra.mxu0 0
        %327 = vmatprep.subr.bf16.mxu0 0
        %328 = vmatpush1.bf16.msra.mxu0 0
        %329 = vmatprep.subr.bf16.mxu0 0
        %330 = vmatpush1.bf16.msra.mxu0 0
        %331 = vmatprep.subr.bf16.mxu0 0
        %332 = vmatpush1.bf16.msra.mxu0 0
        %333 = vmatprep.subr.bf16.mxu0 0
        %334 = vmatpush1.bf16.msra.mxu0 %v314
        %335 = vmatprep.subr.bf16.mxu0 0
        %336 = vmatpush1.bf16.msra.mxu0 %v313
        %337 = vmatprep.subr.bf16.mxu0 0
        %338 = vmatpush2.bf16.msra.mxu0 0
        %339 = vmatprep.subr.bf16.mxu0 0
        %340 = vmatpush2.bf16.msra.mxu0 0
        %341 = vmatprep.subr.bf16.mxu0 0
        %342 = vmatpush2.bf16.msra.mxu0 0
        %343 = vmatprep.subr.bf16.mxu0 0
        %344 = vmatpush2.bf16.msra.mxu0 0
        %345 = vmatprep.subr.bf16.mxu0 0
        %346 = vmatpush2.bf16.msra.mxu0 0
        %347 = vmatprep.subr.bf16.mxu0 0
        %348 = vmatpush2.bf16.msra.mxu0 0
        %349 = vmatprep.subr.bf16.mxu0 0
        %350 = vmatpush2.bf16.msra.mxu0 0
        %351 = vmatprep.subr.bf16.mxu0 0
        %352 = vmatpush2.bf16.msra.mxu0 0
        %353 = vmatprep.mubr.bf16.mxu0 0
        %354 = vmatmul.mubr.bf16.gmra.mxu0 %v319
        %v355 = vpop.f32.mrf.mxu0
        %v356 = vadd.f32 %v303, %v355
        %v357 = vpop.f32.mrf.mxu0
        %v358 = vpop.f32.mrf.mxu0
        %v359 = vpop.f32.mrf.mxu0
        %360 = vdwg.mxu0
        %v361 = vmul.f32 %v356, 0.5
        %v362 = vmul.f32 %v356, 0.70710677
        %v363 = verf.f32.pop %v362
        %v364 = vadd.f32 %v363, 1.0
        %v365 = vmul.f32 %v361, %v364
        %v366 = vld [vmem:[#allocation2] sm:$0xff]
        %v367 = vpack.c.bf16 %v365, %v365
        %v368 = vld [vmem:[%s283] sm:$0xf]
        %v369 = vld [vmem:[%s283 + $0x4] sm:$0xf]
        %v370 = vld [vmem:[%s283 + $0x8] sm:$0xf]
        %v371 = vld [vmem:[%s283 + $0xc] sm:$0xf]
        %v372 = vld [vmem:[%s283 + $0x10] sm:$0xf]
        %v373 = vld [vmem:[%s283 + $0x14] sm:$0xf]
        %v374 = vld [vmem:[%s283 + $0x18] sm:$0xf]
        %v375 = vld [vmem:[%s283 + $0x1c] sm:$0xf]
        %v376 = vld [vmem:[%s283 + $0x20] sm:$0xf]
        %v377 = vld [vmem:[%s283 + $0x24] sm:$0xf]
        %v378 = vld [vmem:[%s283 + $0x28] sm:$0xf]
        %v379 = vld [vmem:[%s283 + $0x2c] sm:$0xf]
        %v380 = vld [vmem:[%s283 + $0x30] sm:$0xf]
        %v381 = vld [vmem:[%s283 + $0x34] sm:$0xf]
        %v382 = vld [vmem:[%s283 + $0x38] sm:$0xf]
        %v383 = vld [vmem:[%s283 + $0x3c] sm:$0xf]
        %v400 = vunpack.c.l.b16 %v368
        %v401 = vunpack.c.l.b16 %v369
        %v402 = vunpack.c.l.b16 %v370
        %v403 = vunpack.c.l.b16 %v371
        %v404 = vunpack.c.l.b16 %v372
        %v405 = vunpack.c.l.b16 %v373
        %v406 = vunpack.c.l.b16 %v374
        %v407 = vunpack.c.l.b16 %v375
        %v408 = vunpack.c.l.b16 %v376
        %v409 = vunpack.c.l.b16 %v377
        %v410 = vunpack.c.l.b16 %v378
        %v411 = vunpack.c.l.b16 %v379
        %v412 = vunpack.c.l.b16 %v380
        %v413 = vunpack.c.l.b16 %v381
        %v414 = vunpack.c.l.b16 %v382
        %v415 = vunpack.c.l.b16 %v383
        %v416 = vpack.c.b16 %v401, %v400
        %v417 = vpack.c.b16 %v403, %v402
        %v418 = vpack.c.b16 %v405, %v404
        %v419 = vpack.c.b16 %v407, %v406
        %v420 = vpack.c.b16 %v409, %v408
        %v421 = vpack.c.b16 %v411, %v410
        %v422 = vpack.c.b16 %v413, %v412
        %v423 = vpack.c.b16 %v415, %v414
        %432 = vmatprep.subr.bf16.mxu0 0
        %433 = vmatpush1.bf16.msra.mxu0 %v423
        %434 = vmatprep.subr.bf16.mxu0 0
        %435 = vmatpush1.bf16.msra.mxu0 %v422
        %436 = vmatprep.subr.bf16.mxu0 0
        %437 = vmatpush1.bf16.msra.mxu0 %v421
        %438 = vmatprep.subr.bf16.mxu0 0
        %439 = vmatpush1.bf16.msra.mxu0 %v420
        %440 = vmatprep.subr.bf16.mxu0 0
        %441 = vmatpush1.bf16.msra.mxu0 %v419
        %442 = vmatprep.subr.bf16.mxu0 0
        %443 = vmatpush1.bf16.msra.mxu0 %v418
        %444 = vmatprep.subr.bf16.mxu0 0
        %445 = vmatpush1.bf16.msra.mxu0 %v417
        %446 = vmatprep.subr.bf16.mxu0 0
        %447 = vmatpush1.bf16.msra.mxu0 %v416
        %448 = vmatprep.subr.bf16.mxu0 0
        %449 = vmatpush2.bf16.msra.mxu0 0
        %450 = vmatprep.subr.bf16.mxu0 0
        %451 = vmatpush2.bf16.msra.mxu0 0
        %452 = vmatprep.subr.bf16.mxu0 0
        %453 = vmatpush2.bf16.msra.mxu0 0
        %454 = vmatprep.subr.bf16.mxu0 0
        %455 = vmatpush2.bf16.msra.mxu0 0
        %456 = vmatprep.subr.bf16.mxu0 0
        %457 = vmatpush2.bf16.msra.mxu0 0
        %458 = vmatprep.subr.bf16.mxu0 0
        %459 = vmatpush2.bf16.msra.mxu0 0
        %460 = vmatprep.subr.bf16.mxu0 0
        %461 = vmatpush2.bf16.msra.mxu0 0
        %462 = vmatprep.subr.bf16.mxu0 0
        %463 = vmatpush2.bf16.msra.mxu0 0
        %464 = vmatprep.mubr.bf16.mxu0 0
        %465 = vmatmul.mubr.bf16.gmra.mxu0 %v367
        %v466 = vpop.f32.mrf.mxu0
        %v467 = vadd.f32 0.0, %v466
        %v468 = vpop.f32.mrf.mxu0
        %v469 = vpop.f32.mrf.mxu0
        %v470 = vpop.f32.mrf.mxu0
        %471 = vdwg.mxu0
        %v472 = vadd.f32 %v366, %v467
        %473 = vst.msk [vmem:[#allocation2] sm:$0xff] %vm317, %v472
        // Predicated region
        $region45: #{tpu_custom_call.1} parent=39 // pred_check
          %p474 = pneg %p286
        $region46: #{tpu_custom_call.1} parent=39 // pred_check_branch
          %476 = sbr.rel (%p474) target = $region48
        $region47: #{tpu_custom_call.1} parent=39 // pred_region
          %v477 = vld [vmem:[#allocation2] sm:$0xff]
          %v478 = vld [vmem:[%s4] sm:$0x1]
          %v480 = vlaneseq
          %v481 = vshrl.u32 %v480, 7
          %v482 = vsub.s32 0, %v481
          %v483 = vrot.slane %v478, %v482
          %v485 = vadd.f32 %v477, %v483
          %486 = vst.msk [vmem:[%s267] sm:$0xff] %vm317, %v485
        $region48: #{tpu_custom_call.1} parent=39 // pred_fallthru
          _
        %s487 = sand.u32 %s164, 1
        %s488 = scalar_lea.sflag [#allocation4], %s487
        %s489 = sand.u32 %s164, 1
        %s490 = smul.addr %s489, 8
        %s491 = scalar_lea.vmem [#allocation3], %s490
        // Predicated region
        $region49: #{tpu_custom_call.1} parent=39 // pred_check
          %p492 = pneg %p174
        $region50: #{tpu_custom_call.1} parent=39 // pred_check_branch
          %494 = sbr.rel (%p492) target = $region52
        $region51: #{tpu_custom_call.1} parent=39 // pred_region
          %s496 = ssub.s32 128, 128
          %497 = vsyncadd %s488, %s496
          %s498 = smul.addr %s23, 128
          %s499 = scalar_lea.hbm %s5, %s498
          %s501 = sshll.u32 %s491, 4
          %s502 = int_to_ptr.vmem [resolvable:$true] %s501
          %504 = dma.vmem_to_hbm [thread:$0]  %s502, 128, %s499, %s488
        $region52: #{tpu_custom_call.1} parent=39 // pred_fallthru
          _
      $region40: #{tpu_custom_call.1} parent=5 // pred_fallthru
        _
      %p505 = scmp.le.s32.totalorder 2, %s14
      // Predicated region
      $region53: #{tpu_custom_call.1} parent=5 // pred_check
        %p506 = pneg %p505
      $region54: #{tpu_custom_call.1} parent=5 // pred_check_branch
        %508 = sbr.rel (%p506) target = $region56
      $region55: #{tpu_custom_call.1} parent=5 // pred_region
        %s509 = ssub.s32 %s14, 2
        // Predicated region
        $region57: #{tpu_custom_call.1} parent=55 // pred_check
          %p510 = pneg %p180
        $region58: #{tpu_custom_call.1} parent=55 // pred_check_branch
          %512 = sbr.rel (%p510) target = $region60
        $region59: #{tpu_custom_call.1} parent=55 // pred_region
          %s513 = sand.u32 %s165, 1
          %s514 = scalar_lea.sflag [#allocation4], %s513
          %s515 = sand.u32 %s165, 1
          %s516 = smul.addr %s515, 8
          %s517 = scalar_lea.vmem [#allocation3], %s516
          %518 = dma.done %s514, 128
        $region60: #{tpu_custom_call.1} parent=55 // pred_fallthru
          _
      $region56: #{tpu_custom_call.1} parent=5 // pred_fallthru
        _
    $region6: #{tpu_custom_call.1} parent=1 // loop_footer
      %s18 = sadd.s32 1, %s14
    $region7: #{tpu_custom_call.1} parent=1 // loop_footer_branch
      %13 = sbr.rel target = $region3
    $region8: #{tpu_custom_call.1} parent=1 // loop_exit
      _
    %519 = vsyncpa [#allocation4], 1
    %s520 = scalar_lea.sflag [#allocation4], 1
    %521 = vsyncpa %s520, 1

</llo_original>
